<compile_context>
chip_gen: v6e
topology: v6e:2x2x1
jax: 0.10.0
libtpu: 0.0.40
codegen_flags: <defaults>
</compile_context>

<pallas_src>
import jax
import jax.numpy as jnp
from jax.experimental import pallas as pl
from jax.experimental.pallas import tpu as pltpu

_LANE = 128
_PALLAS_MIN_BYTES = 1 << 20      # below 1 MiB, launch overhead > work: use fused XLA abs
_TILE_BYTES_BUDGET = 4 << 20     # 4 MiB/tile -> 16 MiB live with in+out double buffers
_VMEM_LIMIT_BYTES = 32 << 20     # explicit scoped-VMEM limit, safe on v5e/v6e/v7x


def _abs_kernel(x_ref, o_ref):
    # elementwise |x| on one lane-dense VMEM tile (VPU; kernel is mem-bound)
    o_ref[...] = jnp.abs(x_ref[...])


def _sublane_multiple(dtype):
    # packed dtypes tile (16,128) / (32,128) per vreg
    return {4: 8, 2: 16, 1: 32}.get(jnp.dtype(dtype).itemsize, 8)


def _resolve_new_shape(total, new_shape):
    new_shape = tuple(int(d) for d in new_shape)
    if -1 in new_shape:
        known = 1
        for d in new_shape:
            if d != -1:
                known *= d
        new_shape = tuple(total // known if d == -1 else d for d in new_shape)
    return new_shape


def _pick_cols(total, sub):
    # widest lane-dense width (multiple of 128) dividing the element count,
    # while keeping rows >= the dtype's sublane multiple (no wasted sublanes)
    for c in (8192, 4096, 2048, 1024, 512, 256, 128):
        if total % c == 0 and (total // c) >= sub:
            return c
    # small/ragged: fall back to any 128-multiple width (rows may be < sub)
    for c in (1024, 512, 256, 128):
        if total % c == 0:
            return c
    return None


def _pick_tile(rows, cols, itemsize, sub):
    # Full-width tiles (TN == cols): each DMA is one contiguous HBM extent.
    # Only split cols if even a single `sub`-row full-width band exceeds budget.
    tn = cols
    if sub * tn * itemsize > _TILE_BYTES_BUDGET:
        tn = None
        for c in (4096, 2048, 1024, 512, 256, 128):
            if cols % c == 0 and sub * c * itemsize <= _TILE_BYTES_BUDGET:
                tn = c
                break
        if tn is None:
            return None

    # largest row count that divides rows, is a multiple of `sub`, and fits budget
    max_tm = _TILE_BYTES_BUDGET // (tn * itemsize)
    tm = None
    t = (min(rows, max_tm) // sub) * sub
    while t >= sub:
        if rows % t == 0:
            tm = t
            break
        t -= sub
    if tm is None:
        # no aligned divisor: a single block over all rows is legal
        # (block dim == full array dim) as long as it still fits the budget
        if rows * tn * itemsize <= _TILE_BYTES_BUDGET:
            return rows, tn
        return None

    # v7x: make sure the leading parallel axis has >= 2 steps so the second
    # TensorCore isn't idle (no effect on v5e/v6e single-TC chips)
    if rows // tm < 2 and tm % 2 == 0 and (tm // 2) % sub == 0:
        tm //= 2

    return tm, tn


def _abs_pallas_2d(x2d, donate_input=False):
    rows, cols = x2d.shape
    itemsize = jnp.dtype(x2d.dtype).itemsize
    tile = _pick_tile(rows, cols, itemsize, _sublane_multiple(x2d.dtype))
    if tile is None:
        return None
    tm, tn = tile
    grid = (rows // tm, cols // tn)
    kwargs = {}
    if donate_input:
        kwargs["input_output_aliases"] = {0: 0}
    return pl.pallas_call(
        _abs_kernel,
        out_shape=jax.ShapeDtypeStruct((rows, cols), x2d.dtype),
        grid=grid,
        in_specs=[pl.BlockSpec((tm, tn), lambda i, j: (i, j))],
        out_specs=pl.BlockSpec((tm, tn), lambda i, j: (i, j)),
        compiler_params=pltpu.CompilerParams(
            # independent tiles -> megacore / v7x dual-TC sharding
            dimension_semantics=("parallel", "parallel"),
            # explicit scoped-VMEM limit so the 4 MiB tile budget is safe on
            # v5e (16 MiB default) as well as v6e/v7x (32 MiB default)
            vmem_limit_bytes=_VMEM_LIMIT_BYTES,
            # allow XLA to fuse the pre-kernel flatten into the input load
            allow_input_fusion=[True],
        ),
        **kwargs,
    )(x2d)


def view_before_op(x, new_shape, *, force_pallas=False, donate_input=False):
    """out = abs(reshape(x, new_shape)); abs hot path runs in a tiled Pallas kernel."""
    total = x.size
    new_shape = _resolve_new_shape(total, new_shape)
    nbytes = total * jnp.dtype(x.dtype).itemsize

    if not force_pallas and nbytes < _PALLAS_MIN_BYTES:
        # tiny tensors: skip the custom call entirely so XLA can fuse abs with
        # neighbouring ops for free
        return jnp.abs(jnp.reshape(x, new_shape))

    cols = _pick_cols(total, _sublane_multiple(x.dtype))
    if cols is not None:
        # lane-dense slab for the kernel; user-visible reshape afterwards
        out2d = _abs_pallas_2d(jnp.reshape(x, (total // cols, cols)),
                               donate_input=donate_input)
        if out2d is not None:
            return jnp.reshape(out2d, new_shape)

    # TODO(synk): element counts not divisible by 128 fall back to fused XLA abs.
    return jnp.abs(jnp.reshape(x, new_shape))


if __name__ == "__main__":
    key = jax.random.PRNGKey(0)

    # small NCHW input consistent with the module's forward
    x = jax.random.normal(key, (2, 4, 16, 16), dtype=jnp.float32)
    new_shape = (8, 256)  # 2*4*16*16 == 8*256
    ref = jnp.abs(jnp.reshape(x, new_shape))

    # 1) default dispatch: tiny tensor -> fused XLA path
    out = jax.block_until_ready(view_before_op(x, new_shape))
    assert out.shape == new_shape and out.dtype == x.dtype
    assert jnp.allclose(out, ref), "mismatch vs reference (small / fused path)"

    # 2) force the Pallas kernel on the same tiny input (single full-vreg block)
    out_forced = jax.block_until_ready(view_before_op(x, new_shape, force_pallas=True))
    assert out_forced.shape == new_shape and out_forced.dtype == x.dtype
    assert jnp.allclose(out_forced, ref), "mismatch vs reference (forced Pallas path)"

    # 3) larger input that exercises the wide-slab, full-width-tile grid path
    x_big = jax.random.normal(jax.random.PRNGKey(0), (2, 4, 128, 512), dtype=jnp.float32)
    new_shape_big = (1024, 512)  # 2*4*128*512 == 1024*512
    out_big = jax.block_until_ready(view_before_op(x_big, new_shape_big))
    ref_big = jnp.abs(jnp.reshape(x_big, new_shape_big))
    assert out_big.shape == new_shape_big and out_big.dtype == x_big.dtype
    assert jnp.allclose(out_big, ref_big), "mismatch vs reference (tiled Pallas path)"

    print("KERNEL_OK")
</pallas_src>

<mosaic_0001>
module attributes {stable_mosaic.version = 11 : i64} {
  func.func @_abs_kernel(%arg0: i32, %arg1: i32, %arg2: memref<8x256xf32, #tpu.memory_space<vmem>>, %arg3: memref<8x256xf32, #tpu.memory_space<vmem>>) attributes {dimension_semantics = [#tpu.dimension_semantics<parallel>, #tpu.dimension_semantics<parallel>], iteration_bounds = array<i64: 1, 1>, scalar_prefetch = 0 : i64, scratch_operands = 0 : i64, tpu.core_type = #tpu.core_type<tc>, window_params = [{transform_indices = @transform_0, window_bounds = array<i64: 8, 256>}, {transform_indices = @transform_1, window_bounds = array<i64: 8, 256>}]} {
    %c0 = arith.constant 0 : index
    %c0_0 = arith.constant 0 : index
    %0 = vector.load %arg2[%c0, %c0_0] : memref<8x256xf32, #tpu.memory_space<vmem>>, vector<8x256xf32>
    %1 = math.absf %0 : vector<8x256xf32>
    %c0_1 = arith.constant 0 : index
    %c0_2 = arith.constant 0 : index
    %2 = vector.load %arg3[%c0_1, %c0_2] : memref<8x256xf32, #tpu.memory_space<vmem>>, vector<8x256xf32>
    tpu.vector_store %arg3[%c0_1, %c0_2], %1 {strides = array<i32>} : memref<8x256xf32, #tpu.memory_space<vmem>>, vector<8x256xf32>,
    return
  }
  func.func @transform_0(%arg0: i32, %arg1: i32) -> (i32, i32) {
    %c0_i32 = arith.constant 0 : i32
    return %arg0, %arg1 : i32, i32
  }
  func.func @transform_1(%arg0: i32, %arg1: i32) -> (i32, i32) {
    %c0_i32 = arith.constant 0 : i32
    return %arg0, %arg1 : i32, i32
  }
}

</mosaic_0001>

<llo_original>
// kernel: tpu_custom_call.1
$region0: #{tpu_custom_call.1}
  #allocation0 [shape = 'u32[]', space=smem, size = 0x4, offset = 0x4, fixed_abs, tag = 'smem constant byte address 0x4 - core index']
  #allocation1 [shape = 'u32[144,128]{1,0:T(1,128)}', space=vmem, size = 0x12000, scoped, tag = 'internal scratch']
  %s0 = inlined_call_operand.hbm [shape: f32[8,256], index: 0, kind: input, shape index: {}]
  %s1 = inlined_call_operand.hbm [shape: f32[8,256], index: 1, kind: output, shape index: {}]
  %s2 = sld [smem:[#allocation0]]
  $region18: #{tpu_custom_call.1} parent=0
    _
  %s4 = ssub.s32 1, %s2
  %s5 = scalar_select 0, %s4, %s2
  $region1: #{tpu_custom_call.1} parent=0
    #allocation2 [shape = 'u8[8192]{0}', space=vmem, size = 0x2000, scoped, tag = 'input window, operand 0, single buffered']
    #allocation3 [shape = 's32[1]{0}', space=sflag, size = 0x4, scoped, tag = 'scoped memory for tpu_custom_call.1']
    #allocation4 [shape = 's32[1]{0}', space=sflag, size = 0x4, scoped, tag = 'scoped memory for tpu_custom_call.1']
    #allocation5 [shape = 'u8[8192]{0}', space=vmem, size = 0x2000, scoped, tag = 'output window, operand 0, single buffered']
    %6 = vsyncpa [#allocation3], 0
    %7 = vsyncpa [#allocation4], 0
    // Predicated region
    $region2: #{tpu_custom_call.1} parent=1 // pred_check
      _
    $region3: #{tpu_custom_call.1} parent=1 // pred_check_branch
      %9 = sbr.rel (0) target = $region5
    $region4: #{tpu_custom_call.1} parent=1 // pred_region
      %s11 = ssub.s32 256, 256
      %12 = vsyncadd [#allocation3], %s11
      %s14 = sshll.u32 [#allocation2], 4
      %s15 = int_to_ptr.vmem [resolvable:$true] %s14
      %17 = dma.hbm_to_vmem [thread:$0]  %s0, 256, %s15, [#allocation3]
    $region5: #{tpu_custom_call.1} parent=1 // pred_fallthru
      _
    // Predicated region
    $region6: #{tpu_custom_call.1} parent=1 // pred_check
      _
    $region7: #{tpu_custom_call.1} parent=1 // pred_check_branch
      %19 = sbr.rel (0) target = $region9
    $region8: #{tpu_custom_call.1} parent=1 // pred_region
      %20 = dma.done [#allocation3], 256
    $region9: #{tpu_custom_call.1} parent=1 // pred_fallthru
      _
    %v21 = vld [vmem:[#allocation2] sm:$0xff]
    %v22 = vld [vmem:[#allocation2 + $0x8] sm:$0xff]
    %v23 = vand.u32 2147483647, %v21
    %v24 = vand.u32 2147483647, %v22
    %25 = vst [vmem:[#allocation5] sm:$0xff] %v23
    %26 = vst [vmem:[#allocation5 + $0x8] sm:$0xff] %v24
    // Predicated region
    $region10: #{tpu_custom_call.1} parent=1 // pred_check
      _
    $region11: #{tpu_custom_call.1} parent=1 // pred_check_branch
      %28 = sbr.rel (0) target = $region13
    $region12: #{tpu_custom_call.1} parent=1 // pred_region
      %s30 = ssub.s32 256, 256
      %31 = vsyncadd [#allocation4], %s30
      %s33 = sshll.u32 [#allocation5], 4
      %s34 = int_to_ptr.vmem [resolvable:$true] %s33
      %36 = dma.vmem_to_hbm [thread:$0]  %s34, 256, %s1, [#allocation4]
    $region13: #{tpu_custom_call.1} parent=1 // pred_fallthru
      _
    // Predicated region
    $region14: #{tpu_custom_call.1} parent=1 // pred_check
      _
    $region15: #{tpu_custom_call.1} parent=1 // pred_check_branch
      %38 = sbr.rel (0) target = $region17
    $region16: #{tpu_custom_call.1} parent=1 // pred_region
      %39 = dma.done [#allocation4], 256
    $region17: #{tpu_custom_call.1} parent=1 // pred_fallthru
      _
    %40 = vsyncpa [#allocation3], 1
    %41 = vsyncpa [#allocation4], 1

</llo_original>
